<compile_context>
chip_gen: v6e
topology: v6e:2x2x1
jax: 0.10.0
libtpu: 0.0.40
codegen_flags: <defaults>
</compile_context>

<pallas_src>
import functools

import jax
import jax.numpy as jnp
from jax.experimental import pallas as pl
from jax.experimental.pallas import tpu as pltpu


def _softmax_loss_kernel(x_ref, w_ref, b_ref, tgt_ref, out_ref, acc_ref, *,
                         n_total, blocks_per_core):
    """One batch tile: fused linear + log_softmax + masked NLL per-row partials."""
    pid_c = pl.program_id(0)   # core slice (megacore on v7x)
    pid_i = pl.program_id(1)   # batch-tile step within this slice

    @pl.when(pid_i == 0)
    def _init():
        acc_ref[...] = jnp.zeros_like(acc_ref)

    x = x_ref[...]                       # (TN, D), input dtype (bf16/f32)
    w = w_ref[...]                       # (C, D), resident across the grid
    tgt = tgt_ref[...]                   # (TN, 1) int32 class indices

    # logits = x @ W^T + b: MXU in the input dtype, f32 accumulation.  The
    # (C, D) torch layout is consumed directly (contract both D axes).
    logits = jax.lax.dot_general(
        x, w, (((1,), (1,)), ((), ())),
        preferred_element_type=jnp.float32) + b_ref[...]            # (TN, C) f32

    tn, c = logits.shape
    row_max = jnp.max(logits, axis=1, keepdims=True)                # (TN, 1)
    shifted = logits - row_max                                      # (TN, C)
    lse = jnp.log(jnp.sum(jnp.exp(shifted), axis=1, keepdims=True))  # (TN, 1)

    # Masked gather of shifted[i, tgt[i]] via select (never multiply), so
    # garbage in padded rows can never turn into NaN that leaks out.
    class_ids = jax.lax.broadcasted_iota(jnp.int32, (tn, c), 1)
    gathered = jnp.sum(jnp.where(class_ids == tgt, shifted, 0.0),
                       axis=1, keepdims=True)                       # (TN, 1)

    # Ragged-tail / padded-block row mask on a (TN, 1) iota only.
    row_base = (pid_c * blocks_per_core + pid_i) * tn
    row_ids = row_base + jax.lax.broadcasted_iota(jnp.int32, (tn, 1), 0)
    acc_ref[...] += jnp.where(row_ids < n_total, lse - gathered, 0.0)

    @pl.when(pid_i == pl.num_programs(1) - 1)
    def _finalize():
        # One cross-sublane reduction per core slice; lane-dense writeback.
        total = jnp.sum(acc_ref[...])
        out_ref[...] = jnp.full(out_ref.shape, total, jnp.float32)


def _vmem_budget_bytes():
    """Generation-aware VMEM budget, also requested as the scoped limit."""
    cap = None
    try:
        cap = getattr(pltpu.get_tpu_info(), "vmem_capacity_bytes", None)
    except Exception:
        cap = None
    if not cap or int(cap) <= 0:
        cap = 64 * 1024 * 1024            # safe floor: v7x has 64 MiB per TC
    budget = int(cap) * 3 // 4            # headroom for compiler scratch
    return min(budget, 100 * 1024 * 1024)


def _default_num_cores():
    """TensorCores per chip (2 on v7x); falls back to 1 if not exposed."""
    try:
        info = pltpu.get_tpu_info()
    except Exception:
        return 1
    for attr in ("num_cores", "core_count", "num_tensorcores"):
        v = getattr(info, attr, None)
        try:
            v = int(v)
        except (TypeError, ValueError):
            continue
        if v >= 1:
            return min(v, 8)
    return 1


def _pick_row_tile(n_rows, d, c, in_bytes, budget_bytes):
    """Largest MXU-friendly row tile that fits the VMEM budget.

    Counts the resident (C, D) weight as double-buffered (constant index_map
    avoids re-DMA but the pipeline still allocates 2 buffers) and ~4 C-wide
    f32 temporaries per row after the masked-gather rewrite.
    """
    fixed = 2 * (d + 1) * c * in_bytes                 # 2x (weight + bias)
    per_row = (2 * d * in_bytes                        # dbl-buffered feature tile
               + 4 * c * 4                             # f32 C-wide temporaries
               + 8 * 128 * 4)                          # (TN,1) lane-padded buffers/acc
    avail = max(budget_bytes - fixed, 1 << 20)
    tn_max = max(8, (int(avail // per_row) // 8) * 8)
    n8 = pl.cdiv(n_rows, 8) * 8
    if tn_max >= n8:
        return min(n8, 4096)                           # whole per-core batch in one tile
    if tn_max >= 512:
        return min((tn_max // 256) * 256, 4096)        # 256-multiple for the MXU M dim
    if tn_max >= 128:
        return (tn_max // 128) * 128
    return tn_max                                      # VMEM-starved (huge C) -> TODO C-tiling


def softmax_loss(features, weight, bias, target, *, focal=False, focal_gamma=0,
                 row_tile=None, num_cores=None):
    """Fused SoftmaxLoss forward: mean_i(-log_softmax(x @ W^T + b)[i, target[i]]).

    Args:
      features: (N, D) activations (f32 or bf16; bf16 feeds the MXU natively).
      weight:   (C, D) linear weight in torch.nn.Linear layout (used as-is).
      bias:     (C,) linear bias, or None.
      target:   (N,) or (N, 1) int class indices in [0, C-1].
      focal:    apply focal re-weighting to the reduced scalar loss.
      focal_gamma: focal focusing parameter.
      row_tile: optional batch tile override (multiple of 8).
      num_cores: optional override for the per-chip TensorCore split.
    """
    features = jnp.asarray(features)
    if features.ndim > 2:
        features = features.squeeze()      # mirrors the module's features.squeeze()
    n, d = features.shape
    weight = jnp.asarray(weight)
    c = weight.shape[0]
    assert weight.shape == (c, d), weight.shape
    if weight.dtype != features.dtype:
        weight = weight.astype(features.dtype)          # matching MXU operand dtypes
    if bias is None:
        b2 = jnp.zeros((1, c), jnp.float32)
    else:
        b2 = jnp.asarray(bias, jnp.float32).reshape(1, c)   # bias add stays f32
    target = jnp.asarray(target, jnp.int32).reshape(n, 1)

    in_bytes = features.dtype.itemsize
    budget = _vmem_budget_bytes()
    ncores = int(num_cores) if num_cores is not None else _default_num_cores()
    ncores = max(1, ncores)

    if row_tile is not None:
        tn = int(row_tile)
    else:
        tn = _pick_row_tile(pl.cdiv(n, ncores), d, c, in_bytes, budget)

    nb = pl.cdiv(n, tn)                   # real row blocks
    ncores = max(1, min(ncores, nb))      # never more slices than blocks
    bpc = pl.cdiv(nb, ncores)             # blocks per core slice (last may be padded)

    # Fully out-of-range logical blocks (padded megacore split) are clamped to
    # the last real block; their rows are removed by the in-kernel row mask.
    def row_map(cc, i):
        return (jnp.minimum(cc * bpc + i, nb - 1), 0)

    kernel = functools.partial(_softmax_loss_kernel, n_total=n,
                               blocks_per_core=bpc)

    out = pl.pallas_call(
        kernel,
        out_shape=jax.ShapeDtypeStruct((ncores, 8, 128), jnp.float32),
        grid_spec=pltpu.PrefetchScalarGridSpec(
            num_scalar_prefetch=0,
            grid=(ncores, bpc),
            in_specs=[
                pl.BlockSpec((tn, d), row_map),                # features tile
                pl.BlockSpec((c, d), lambda cc, i: (0, 0)),    # weight (resident)
                pl.BlockSpec((1, c), lambda cc, i: (0, 0)),    # bias (resident)
                pl.BlockSpec((tn, 1), row_map),                # target tile
            ],
            out_specs=pl.BlockSpec((1, 8, 128), lambda cc, i: (cc, 0, 0)),
            scratch_shapes=[pltpu.VMEM((tn, 1), jnp.float32)],
        ),
        compiler_params=pltpu.CompilerParams(
            dimension_semantics=("parallel", "arbitrary"),
            vmem_limit_bytes=budget),
        cost_estimate=pl.CostEstimate(
            flops=2 * n * d * c,
            transcendentals=n * c,
            bytes_accessed=(n * d + c * d) * in_bytes + c * 4 + n * 4
                           + ncores * 8 * 128 * 4),
    )(features, weight, b2, target)

    loss = jnp.sum(out[:, 0, 0]) / jnp.float32(n)
    if focal:
        # NOTE: focal re-weighting is applied to the already-mean-reduced loss,
        # exactly matching the PyTorch module (NOT the per-sample standard
        # focal-loss definition) — do not "fix" this.
        loss = (1.0 - jnp.exp(-loss)) ** focal_gamma * loss
    return loss


def _reference(features, weight, bias, target, *, focal=False, focal_gamma=0):
    f = jnp.asarray(features, jnp.float32)
    w = jnp.asarray(weight, jnp.float32)
    logits = f @ w.T + (0.0 if bias is None else jnp.asarray(bias, jnp.float32))
    logprob = jax.nn.log_softmax(logits, axis=-1)
    n = f.shape[0]
    loss = -jnp.mean(logprob[jnp.arange(n), jnp.asarray(target).reshape(-1)])
    if focal:
        loss = (1.0 - jnp.exp(-loss)) ** focal_gamma * loss
    return loss


if __name__ == "__main__":
    key = jax.random.PRNGKey(0)
    kf, kw, kb, kt, kf2, kt2, kf3, kt3 = jax.random.split(key, 8)

    # 1) Single-tile f32 case: N=8, in_features=32, out_features=128.
    N, D, C = 8, 32, 128
    features = jax.random.normal(kf, (N, D), dtype=jnp.float32)
    weight = jax.random.normal(kw, (C, D), dtype=jnp.float32) * 0.05
    bias = jax.random.normal(kb, (C,), dtype=jnp.float32) * 0.01
    target = jax.random.randint(kt, (N,), 0, C, dtype=jnp.int32)

    loss = jax.block_until_ready(softmax_loss(features, weight, bias, target))
    ref = _reference(features, weight, bias, target)
    assert jnp.allclose(loss, ref, atol=1e-4, rtol=1e-4), (loss, ref)

    # 2) Focal re-weighting (applied to the reduced scalar, as in the module).
    loss_f = jax.block_until_ready(
        softmax_loss(features, weight, bias, target, focal=True, focal_gamma=2.0))
    ref_f = _reference(features, weight, bias, target, focal=True, focal_gamma=2.0)
    assert jnp.allclose(loss_f, ref_f, atol=1e-4, rtol=1e-4), (loss_f, ref_f)

    # 3) Multi-tile + ragged tail: N=100, 16-row tiles -> 7 blocks, last block
    #    masks 12 padded rows.
    N2, D2, C2 = 100, 64, 256
    features2 = jax.random.normal(kf2, (N2, D2), dtype=jnp.float32)
    weight2 = jax.random.normal(kw, (C2, D2), dtype=jnp.float32) * 0.05
    bias2 = jax.random.normal(kb, (C2,), dtype=jnp.float32) * 0.01
    target2 = jax.random.randint(kt2, (N2,), 0, C2, dtype=jnp.int32)

    loss2 = jax.block_until_ready(
        softmax_loss(features2, weight2, bias2, target2, row_tile=16))
    ref2 = _reference(features2, weight2, bias2, target2)
    assert jnp.allclose(loss2, ref2, atol=1e-4, rtol=1e-4), (loss2, ref2)

    # 4) Forced 2-slice (megacore-shaped) grid on the same ragged case:
    #    7 real blocks -> 2 slices x 4 steps, one fully padded block exercised.
    loss2b = jax.block_until_ready(
        softmax_loss(features2, weight2, bias2, target2, row_tile=16, num_cores=2))
    assert jnp.allclose(loss2b, ref2, atol=1e-4, rtol=1e-4), (loss2b, ref2)

    # 5) bf16 activations/weights feeding the MXU natively (f32 accumulation).
    N3, D3, C3 = 256, 128, 512
    features3 = (jax.random.normal(kf3, (N3, D3), jnp.float32) * 0.5).astype(jnp.bfloat16)
    weight3 = (jax.random.normal(kw, (C3, D3), jnp.float32) * 0.05).astype(jnp.bfloat16)
    bias3 = jax.random.normal(kb, (C3,), jnp.float32) * 0.01
    target3 = jax.random.randint(kt3, (N3,), 0, C3, dtype=jnp.int32)

    loss3 = jax.block_until_ready(softmax_loss(features3, weight3, bias3, target3))
    ref3 = _reference(features3, weight3, bias3, target3)
    assert jnp.allclose(loss3, ref3, atol=2e-2, rtol=2e-2), (loss3, ref3)

    print("KERNEL_OK")
</pallas_src>

<mosaic_0001>
module attributes {stable_mosaic.version = 11 : i64} {
  func.func @_softmax_loss_kernel(%arg0: i32, %arg1: i32, %arg2: memref<8x32xf32, #tpu.memory_space<vmem>>, %arg3: memref<128x32xf32, #tpu.memory_space<vmem>>, %arg4: memref<1x128xf32, #tpu.memory_space<vmem>>, %arg5: memref<8x1xi32, #tpu.memory_space<vmem>>, %arg6: memref<1x8x128xf32, #tpu.memory_space<vmem>>, %arg7: memref<8x1xf32, #tpu.memory_space<vmem>>) attributes {dimension_semantics = [#tpu.dimension_semantics<parallel>, #tpu.dimension_semantics<arbitrary>], iteration_bounds = array<i64: 1, 1>, scalar_prefetch = 0 : i64, scratch_operands = 1 : i64, tpu.core_type = #tpu.core_type<tc>, window_params = [{transform_indices = @transform_0, window_bounds = array<i64: 8, 32>}, {pipeline_mode = #tpu.pipeline_mode<synchronous>, transform_indices = @transform_1, window_bounds = array<i64: 128, 32>}, {pipeline_mode = #tpu.pipeline_mode<synchronous>, transform_indices = @transform_2, window_bounds = array<i64: 1, 128>}, {transform_indices = @transform_3, window_bounds = array<i64: 8, 1>}, {transform_indices = @transform_4, window_bounds = array<i64: 1, 8, 128>}]} {
    %c0_i32 = arith.constant 0 : i32
    %0 = arith.cmpi eq, %arg1, %c0_i32 : i32
    %1 = arith.extui %0 : i1 to i32
    %c0_i32_0 = arith.constant 0 : i32
    %2 = arith.cmpi ne, %1, %c0_i32_0 : i32
    scf.if %2 {
      %cst_20 = arith.constant 0.000000e+00 : f32
      %42 = vector.broadcast %cst_20 : f32 to vector<8x1xf32>
      %c0_21 = arith.constant 0 : index
      %c0_22 = arith.constant 0 : index
      %43 = vector.load %arg7[%c0_21, %c0_22] : memref<8x1xf32, #tpu.memory_space<vmem>>, vector<8x1xf32>
      tpu.vector_store %arg7[%c0_21, %c0_22], %42 {strides = array<i32>} : memref<8x1xf32, #tpu.memory_space<vmem>>, vector<8x1xf32>,
    } else {
    }
    %c0 = arith.constant 0 : index
    %c0_1 = arith.constant 0 : index
    %3 = vector.load %arg2[%c0, %c0_1] : memref<8x32xf32, #tpu.memory_space<vmem>>, vector<8x32xf32>
    %c0_2 = arith.constant 0 : index
    %c0_3 = arith.constant 0 : index
    %4 = vector.load %arg3[%c0_2, %c0_3] : memref<128x32xf32, #tpu.memory_space<vmem>>, vector<128x32xf32>
    %c0_4 = arith.constant 0 : index
    %c0_5 = arith.constant 0 : index
    %5 = vector.load %arg5[%c0_4, %c0_5] : memref<8x1xi32, #tpu.memory_space<vmem>>, vector<8x1xi32>
    %cst = arith.constant dense<0.000000e+00> : vector<8x128xf32>
    %6 = tpu.matmul %3, %4, %cst {dimension_numbers = #tpu.dot_dimension_numbers<[1], [1], [0], [0], [0, 0, 1, 0], [], []>} : vector<8x32xf32>, vector<128x32xf32>, vector<8x128xf32> -> vector<8x128xf32>
    %c0_6 = arith.constant 0 : index
    %c0_7 = arith.constant 0 : index
    %7 = vector.load %arg4[%c0_6, %c0_7] : memref<1x128xf32, #tpu.memory_space<vmem>>, vector<1x128xf32>
    %8 = vector.broadcast %7 : vector<1x128xf32> to vector<8x128xf32>
    %9 = arith.addf %6, %8 : vector<8x128xf32>
    %cst_8 = arith.constant dense<0xFF800000> : vector<8xf32>
    %10 = vector.multi_reduction <maximumf>, %9, %cst_8 [1] : vector<8x128xf32> to vector<8xf32>
    %11 = vector.shape_cast %10 : vector<8xf32> to vector<8x1xf32>
    %12 = vector.broadcast %11 : vector<8x1xf32> to vector<8x128xf32>
    %13 = arith.subf %9, %12 : vector<8x128xf32>
    %14 = math.exp %13 : vector<8x128xf32>
    %cst_9 = arith.constant dense<0.000000e+00> : vector<8xf32>
    %15 = vector.multi_reduction <add>, %14, %cst_9 [1] : vector<8x128xf32> to vector<8xf32>
    %16 = vector.shape_cast %15 : vector<8xf32> to vector<8x1xf32>
    %17 = math.log %16 : vector<8x1xf32>
    %18 = tpu.iota {dimensions = array<i32: 1>} : vector<8x128xi32>
    %19 = vector.broadcast %5 : vector<8x1xi32> to vector<8x128xi32>
    %20 = arith.cmpi eq, %18, %19 : vector<8x128xi32>
    %cst_10 = arith.constant 0.000000e+00 : f32
    %21 = vector.broadcast %cst_10 : f32 to vector<8x128xf32>
    %22 = arith.select %20, %13, %21 : vector<8x128xi1>, vector<8x128xf32>
    %cst_11 = arith.constant dense<0.000000e+00> : vector<8xf32>
    %23 = vector.multi_reduction <add>, %22, %cst_11 [1] : vector<8x128xf32> to vector<8xf32>
    %24 = vector.shape_cast %23 : vector<8xf32> to vector<8x1xf32>
    %c1_i32 = arith.constant 1 : i32
    %25 = arith.muli %arg0, %c1_i32 : i32
    %26 = arith.addi %25, %arg1 : i32
    %c8_i32 = arith.constant 8 : i32
    %27 = arith.muli %26, %c8_i32 : i32
    %28 = tpu.iota {dimensions = array<i32: 0>} : vector<8x1xi32>
    %29 = vector.broadcast %27 : i32 to vector<8x1xi32>
    %30 = arith.addi %29, %28 : vector<8x1xi32>
    %c0_12 = arith.constant 0 : index
    %c0_13 = arith.constant 0 : index
    %31 = vector.load %arg7[%c0_12, %c0_13] : memref<8x1xf32, #tpu.memory_space<vmem>>, vector<8x1xf32>
    %c8_i32_14 = arith.constant 8 : i32
    %32 = vector.broadcast %c8_i32_14 : i32 to vector<8x1xi32>
    %33 = arith.cmpi slt, %30, %32 : vector<8x1xi32>
    %34 = arith.subf %17, %24 : vector<8x1xf32>
    %cst_15 = arith.constant 0.000000e+00 : f32
    %35 = vector.broadcast %cst_15 : f32 to vector<8x1xf32>
    %36 = arith.select %33, %34, %35 : vector<8x1xi1>, vector<8x1xf32>
    %37 = arith.addf %31, %36 : vector<8x1xf32>
    %c0_16 = arith.constant 0 : index
    %c0_17 = arith.constant 0 : index
    %38 = vector.load %arg7[%c0_16, %c0_17] : memref<8x1xf32, #tpu.memory_space<vmem>>, vector<8x1xf32>
    tpu.vector_store %arg7[%c0_16, %c0_17], %37 {strides = array<i32>} : memref<8x1xf32, #tpu.memory_space<vmem>>, vector<8x1xf32>,
    %c0_i32_18 = arith.constant 0 : i32
    %39 = arith.cmpi eq, %arg1, %c0_i32_18 : i32
    %40 = arith.extui %39 : i1 to i32
    %c0_i32_19 = arith.constant 0 : i32
    %41 = arith.cmpi ne, %40, %c0_i32_19 : i32
    scf.if %41 {
      %c0_20 = arith.constant 0 : index
      %c0_21 = arith.constant 0 : index
      %42 = vector.load %arg7[%c0_20, %c0_21] : memref<8x1xf32, #tpu.memory_space<vmem>>, vector<8x1xf32>
      %43 = vector.shape_cast %42 : vector<8x1xf32> to vector<1x8x1xf32>
      %cst_22 = arith.constant dense<0.000000e+00> : vector<1xf32>
      %44 = vector.multi_reduction <add>, %43, %cst_22 [1, 2] : vector<1x8x1xf32> to vector<1xf32>
      %45 = vector.shape_cast %44 : vector<1xf32> to vector<1x1x1xf32>
      %46 = vector.extract %45[0, 0, 0] : f32 from vector<1x1x1xf32>
      %47 = vector.broadcast %46 : f32 to vector<1x8x128xf32>
      %c0_23 = arith.constant 0 : index
      %c0_24 = arith.constant 0 : index
      %c0_25 = arith.constant 0 : index
      %48 = vector.load %arg6[%c0_23, %c0_24, %c0_25] : memref<1x8x128xf32, #tpu.memory_space<vmem>>, vector<1x8x128xf32>
      tpu.vector_store %arg6[%c0_23, %c0_24, %c0_25], %47 {strides = array<i32>} : memref<1x8x128xf32, #tpu.memory_space<vmem>>, vector<1x8x128xf32>,
    } else {
    }
    return
  }
  func.func @transform_0(%arg0: i32, %arg1: i32) -> (i32, i32) {
    %c1_i32 = arith.constant 1 : i32
    %0 = arith.muli %arg0, %c1_i32 : i32
    %1 = arith.addi %0, %arg1 : i32
    %c0_i32 = arith.constant 0 : i32
    %2 = arith.minsi %1, %c0_i32 : i32
    %c0_i32_0 = arith.constant 0 : i32
    %c0_i32_1 = arith.constant 0 : i32
    return %2, %c0_i32_0 : i32, i32
  }
  func.func @transform_1(%arg0: i32, %arg1: i32) -> (i32, i32) {
    %c0_i32 = arith.constant 0 : i32
    %c0_i32_0 = arith.constant 0 : i32
    %c0_i32_1 = arith.constant 0 : i32
    return %c0_i32, %c0_i32_0 : i32, i32
  }
  func.func @transform_2(%arg0: i32, %arg1: i32) -> (i32, i32) {
    %c0_i32 = arith.constant 0 : i32
    %c0_i32_0 = arith.constant 0 : i32
    %c0_i32_1 = arith.constant 0 : i32
    return %c0_i32, %c0_i32_0 : i32, i32
  }
  func.func @transform_3(%arg0: i32, %arg1: i32) -> (i32, i32) {
    %c1_i32 = arith.constant 1 : i32
    %0 = arith.muli %arg0, %c1_i32 : i32
    %1 = arith.addi %0, %arg1 : i32
    %c0_i32 = arith.constant 0 : i32
    %2 = arith.minsi %1, %c0_i32 : i32
    %c0_i32_0 = arith.constant 0 : i32
    %c0_i32_1 = arith.constant 0 : i32
    return %2, %c0_i32_0 : i32, i32
  }
  func.func @transform_4(%arg0: i32, %arg1: i32) -> (i32, i32, i32) {
    %c0_i32 = arith.constant 0 : i32
    %c0_i32_0 = arith.constant 0 : i32
    %c0_i32_1 = arith.constant 0 : i32
    return %arg0, %c0_i32, %c0_i32_0 : i32, i32, i32
  }
}

</mosaic_0001>

<llo_original>
// kernel: tpu_custom_call.1
$region0: #{tpu_custom_call.1}
  #allocation0 [shape = 'u32[]', space=smem, size = 0x4, offset = 0x4, fixed_abs, tag = 'smem constant byte address 0x4 - core index']
  #allocation1 [shape = 'u32[144,128]{1,0:T(1,128)}', space=vmem, size = 0x12000, scoped, tag = 'internal scratch']
  #allocation2 [shape = 'f32[8,1]{1,0:T(8,128)}', space=vmem, size = 0x1000, scoped, tag = 'scratch operand']
  %s0 = inlined_call_operand.vmem [shape: f32[8,32], index: 0, kind: input, shape index: {}]
  %s1 = inlined_call_operand.vmem [shape: f32[128,32], index: 1, kind: input, shape index: {}]
  %s2 = inlined_call_operand.vmem [shape: f32[1,128], index: 2, kind: input, shape index: {}]
  %s3 = inlined_call_operand.vmem [shape: s32[8,1], index: 3, kind: input, shape index: {}]
  %s4 = inlined_call_operand.hbm [shape: f32[1,8,128], index: 4, kind: output, shape index: {}]
  %s5 = sld [smem:[#allocation0]]
  $region34: #{tpu_custom_call.1} parent=0
    _
  %s7 = ssub.s32 1, %s5
  %s8 = scalar_select 0, %s7, %s5
  $region1: #{tpu_custom_call.1} parent=0
    #allocation3 [shape = 'u8[4096]{0}', space=vmem, size = 0x1000, scoped, tag = 'output window, operand 0, single buffered']
    #allocation4 [shape = 's32[1]{0}', space=sflag, size = 0x4, scoped, tag = 'scoped memory for tpu_custom_call.1']
    %9 = vsyncpa [#allocation4], 0
    // Predicated region
    $region2: #{tpu_custom_call.1} parent=1 // pred_check
      _
    $region3: #{tpu_custom_call.1} parent=1 // pred_check_branch
      %11 = sbr.rel (0) target = $region5
    $region4: #{tpu_custom_call.1} parent=1 // pred_region
      %s12 = sadd.s32 0, 0
      %p13 = scmp.lt.s32.totalorder %s12, 0
      %s14 = scalar_select %p13, %s12, 0
      %p15 = scmp.lt.s32.totalorder %s14, 0
      %s16 = scalar_select %p15, %s14, 0
      %s17 = smul.addr %s16, 8
      %s18 = scalar_lea.vmem %s0, %s17
      %s19 = sadd.s32 0, 0
      %p20 = scmp.lt.s32.totalorder %s19, 0
      %s21 = scalar_select %p20, %s19, 0
    $region5: #{tpu_custom_call.1} parent=1 // pred_fallthru
      _
    // Predicated region
    $region6: #{tpu_custom_call.1} parent=1 // pred_check
      _
    $region7: #{tpu_custom_call.1} parent=1 // pred_check_branch
      %23 = sbr.rel (0) target = $region9
    $region8: #{tpu_custom_call.1} parent=1 // pred_region
      _
    $region9: #{tpu_custom_call.1} parent=1 // pred_fallthru
      _
    // Predicated region
    $region10: #{tpu_custom_call.1} parent=1 // pred_check
      _
    $region11: #{tpu_custom_call.1} parent=1 // pred_check_branch
      %25 = sbr.rel (0) target = $region13
    $region12: #{tpu_custom_call.1} parent=1 // pred_region
      _
    $region13: #{tpu_custom_call.1} parent=1 // pred_fallthru
      _
    // Predicated region
    $region14: #{tpu_custom_call.1} parent=1 // pred_check
      _
    $region15: #{tpu_custom_call.1} parent=1 // pred_check_branch
      %27 = sbr.rel (0) target = $region17
    $region16: #{tpu_custom_call.1} parent=1 // pred_region
      %s28 = sadd.s32 0, 0
      %p29 = scmp.lt.s32.totalorder %s28, 0
      %s30 = scalar_select %p29, %s28, 0
      %p31 = scmp.lt.s32.totalorder %s30, 0
      %s32 = scalar_select %p31, %s30, 0
      %s33 = smul.addr %s32, 8
      %s34 = scalar_lea.vmem %s3, %s33
      %s35 = sadd.s32 0, 0
      %p36 = scmp.lt.s32.totalorder %s35, 0
      %s37 = scalar_select %p36, %s35, 0
    $region17: #{tpu_custom_call.1} parent=1 // pred_fallthru
      _
    %s38 = sadd.s32 0, 0
    %p39 = scmp.lt.s32.totalorder %s38, 0
    %s40 = scalar_select %p39, %s38, 0
    %p41 = scmp.lt.s32.totalorder %s40, 0
    %s42 = scalar_select %p41, %s40, 0
    %s43 = smul.addr %s42, 8
    %s44 = scalar_lea.vmem %s0, %s43
    %s45 = sadd.s32 0, 0
    %p46 = scmp.lt.s32.totalorder %s45, 0
    %s47 = scalar_select %p46, %s45, 0
    %p48 = scmp.lt.s32.totalorder %s47, 0
    %s49 = scalar_select %p48, %s47, 0
    %s50 = smul.addr %s49, 8
    %s51 = scalar_lea.vmem %s3, %s50
    %s52 = sadd.s32 0, 0
    %p53 = scmp.lt.s32.totalorder %s52, 0
    %s54 = scalar_select %p53, %s52, 0
    %p55 = scmp.lt.s32.totalorder %s54, 0
    %s56 = scalar_select %p55, %s54, 0
    %s57 = smul.addr %s56, 8
    %s58 = scalar_lea.vmem %s0, %s57
    %s59 = sadd.s32 0, 0
    %p60 = scmp.lt.s32.totalorder %s59, 0
    %s61 = scalar_select %p60, %s59, 0
    %s62 = sadd.s32 0, 0
    %p63 = scmp.lt.s32.totalorder %s62, 0
    %s64 = scalar_select %p63, %s62, 0
    %p65 = scmp.lt.s32.totalorder %s64, 0
    %s66 = scalar_select %p65, %s64, 0
    %s67 = smul.addr %s66, 8
    %s68 = scalar_lea.vmem %s3, %s67
    %s69 = sadd.s32 0, 0
    %p70 = scmp.lt.s32.totalorder %s69, 0
    %s71 = scalar_select %p70, %s69, 0
    %p72 = scmp.eq.s32.totalorder 0, 0
    // Predicated region
    $region18: #{tpu_custom_call.1} parent=1 // pred_check
      %p73 = pneg %p72
    $region19: #{tpu_custom_call.1} parent=1 // pred_check_branch
      %75 = sbr.rel (%p73) target = $region21
    $region20: #{tpu_custom_call.1} parent=1 // pred_region
      %vm76 = vcmask 7168
      %77 = vst.msk [vmem:[#allocation2] sm:$0xff] %vm76, 0.0
    $region21: #{tpu_custom_call.1} parent=1 // pred_fallthru
      _
    %v78 = vld [vmem:[%s58] sm:$0xff]
    %v79 = vld [vmem:[%s1] sm:$0xff]
    %v80 = vld [vmem:[%s1 + $0x8] sm:$0xff]
    %v81 = vld [vmem:[%s1 + $0x10] sm:$0xff]
    %v82 = vld [vmem:[%s1 + $0x18] sm:$0xff]
    %v83 = vld [vmem:[%s1 + $0x20] sm:$0xff]
    %v84 = vld [vmem:[%s1 + $0x28] sm:$0xff]
    %v85 = vld [vmem:[%s1 + $0x30] sm:$0xff]
    %v86 = vld [vmem:[%s1 + $0x38] sm:$0xff]
    %v87 = vld [vmem:[%s1 + $0x40] sm:$0xff]
    %v88 = vld [vmem:[%s1 + $0x48] sm:$0xff]
    %v89 = vld [vmem:[%s1 + $0x50] sm:$0xff]
    %v90 = vld [vmem:[%s1 + $0x58] sm:$0xff]
    %v91 = vld [vmem:[%s1 + $0x60] sm:$0xff]
    %v92 = vld [vmem:[%s1 + $0x68] sm:$0xff]
    %v93 = vld [vmem:[%s1 + $0x70] sm:$0xff]
    %v94 = vld [vmem:[%s1 + $0x78] sm:$0xff]
    %v95 = vld [vmem:[%s68] sm:$0xff]
    %v96 = vld [vmem:[%s2] sm:$0x1]
    %v98 = vlaneseq
    %v99 = vshrl.u32 %v98, 7
    %v100 = vsub.s32 0, %v99
    %v101 = vrot.slane %v96, %v100
    %vm103 = vcmask 261120
    %v105 = vsel %vm103, %v78, 0
    %v108 = vsel %vm103, %v79, 0
    %v111 = vsel %vm103, %v80, 0
    %v114 = vsel %vm103, %v81, 0
    %v117 = vsel %vm103, %v82, 0
    %v120 = vsel %vm103, %v83, 0
    %v123 = vsel %vm103, %v84, 0
    %v126 = vsel %vm103, %v85, 0
    %v129 = vsel %vm103, %v86, 0
    %v132 = vsel %vm103, %v87, 0
    %v135 = vsel %vm103, %v88, 0
    %v138 = vsel %vm103, %v89, 0
    %v141 = vsel %vm103, %v90, 0
    %v144 = vsel %vm103, %v91, 0
    %v147 = vsel %vm103, %v92, 0
    %v150 = vsel %vm103, %v93, 0
    %v153 = vsel %vm103, %v94, 0
    %155 = vmatprep.subr.mxu0 0.0
    %156 = vmatpush1.xpose.msra.mxu0 %v153
    %157 = vmatprep.subr.mxu0 0.0
    %158 = vmatpush1.xpose.msra.mxu0 %v150
    %159 = vmatprep.subr.mxu0 0.0
    %160 = vmatpush1.xpose.msra.mxu0 %v147
    %161 = vmatprep.subr.mxu0 0.0
    %162 = vmatpush1.xpose.msra.mxu0 %v144
    %163 = vmatprep.subr.mxu0 0.0
    %164 = vmatpush1.xpose.msra.mxu0 %v141
    %165 = vmatprep.subr.mxu0 0.0
    %166 = vmatpush1.xpose.msra.mxu0 %v138
    %167 = vmatprep.subr.mxu0 0.0
    %168 = vmatpush1.xpose.msra.mxu0 %v135
    %169 = vmatprep.subr.mxu0 0.0
    %170 = vmatpush1.xpose.msra.mxu0 %v132
    %171 = vmatprep.subr.mxu0 0.0
    %172 = vmatpush1.xpose.msra.mxu0 %v129
    %173 = vmatprep.subr.mxu0 0.0
    %174 = vmatpush1.xpose.msra.mxu0 %v126
    %175 = vmatprep.subr.mxu0 0.0
    %176 = vmatpush1.xpose.msra.mxu0 %v123
    %177 = vmatprep.subr.mxu0 0.0
    %178 = vmatpush1.xpose.msra.mxu0 %v120
    %179 = vmatprep.subr.mxu0 0.0
    %180 = vmatpush1.xpose.msra.mxu0 %v117
    %181 = vmatprep.subr.mxu0 0.0
    %182 = vmatpush1.xpose.msra.mxu0 %v114
    %183 = vmatprep.subr.mxu0 0.0
    %184 = vmatpush1.xpose.msra.mxu0 %v111
    %185 = vmatprep.subr.mxu0 0.0
    %186 = vmatpush1.xpose.msra.mxu0 %v108
    %187 = vmatprep.subr.mxu0 0.0
    %188 = vmatpush2.xpose.msra.mxu0 0.0
    %189 = vmatprep.subr.mxu0 0.0
    %190 = vmatpush2.xpose.msra.mxu0 0.0
    %191 = vmatprep.subr.mxu0 0.0
    %192 = vmatpush2.xpose.msra.mxu0 0.0
    %193 = vmatprep.subr.mxu0 0.0
    %194 = vmatpush2.xpose.msra.mxu0 0.0
    %195 = vmatprep.subr.mxu0 0.0
    %196 = vmatpush2.xpose.msra.mxu0 0.0
    %197 = vmatprep.subr.mxu0 0.0
    %198 = vmatpush2.xpose.msra.mxu0 0.0
    %199 = vmatprep.subr.mxu0 0.0
    %200 = vmatpush2.xpose.msra.mxu0 0.0
    %201 = vmatprep.subr.mxu0 0.0
    %202 = vmatpush2.xpose.msra.mxu0 0.0
    %203 = vmatprep.subr.mxu0 0.0
    %204 = vmatpush2.xpose.msra.mxu0 0.0
    %205 = vmatprep.subr.mxu0 0.0
    %206 = vmatpush2.xpose.msra.mxu0 0.0
    %207 = vmatprep.subr.mxu0 0.0
    %208 = vmatpush2.xpose.msra.mxu0 0.0
    %209 = vmatprep.subr.mxu0 0.0
    %210 = vmatpush2.xpose.msra.mxu0 0.0
    %211 = vmatprep.subr.mxu0 0.0
    %212 = vmatpush2.xpose.msra.mxu0 0.0
    %213 = vmatprep.subr.mxu0 0.0
    %214 = vmatpush2.xpose.msra.mxu0 0.0
    %215 = vmatprep.subr.mxu0 0.0
    %216 = vmatpush2.xpose.msra.mxu0 0.0
    %217 = vmatprep.subr.mxu0 0.0
    %218 = vmatpush2.xpose.msra.mxu0 0.0
    %219 = vmatprep.mubr.f32.mxu0 0.0
    %220 = vmatmul.mubr.f32.gmra.mxu0 %v105
    %v221 = vpop.f32.mrf.mxu0
    %v222 = vadd.f32 %v101, %v221
    %v223 = vpop.f32.mrf.mxu0
    %224 = vdwg.mxu0
    %225 = vmax.xlane.f32.xlu0 %v222
    %v226 = vpop.xlane.xlu0 %225
    %v227 = vsub.f32 %v222, %v226
    %v228 = vmul.f32 %v227, 1.442695
    %v229 = vpow.pop %v228
    %230 = vadd.xlane.f32.xlu0 %v229
    %v231 = vpop.xlane.xlu0 %230
    %v232 = vlog2.pop %v231
    %v233 = vmul.f32 %v232, 0.6931472
    %v234 = vlaneseq
    %v235 = vand.u32 %v234, 127
    %236 = vset.pattern.permute.xlu0 0
    %237 = vperm.xlu0 %236, %v95
    %v238 = vpop.permute.xlu0 %237
    %vm239 = vcmp.eq.s32.totalorder %v235, %v238
    %v240 = vsel %vm239, %v227, 0.0
    %241 = vadd.xlane.f32.xlu0 %v240
    %v242 = vpop.xlane.xlu0 %241
    %s243 = sadd.s32 0, 0
    %s244 = smul.u32 %s243, 8
    %v245 = vlaneseq
    %v246 = vshrl.u32 %v245, 7
    %v247 = vstv %s244
    %v248 = vadd.s32 %v247, %v246
    %v249 = vld [vmem:[#allocation2] sm:$0xff]
    %vm250 = vcmp.lt.s32.totalorder %v248, 8
    %v251 = vsub.f32 %v233, %v242
    %v252 = vsel %vm250, %v251, 0.0
    %v253 = vadd.f32 %v249, %v252
    %vm254 = vcmask 7168
    %255 = vst.msk [vmem:[#allocation2] sm:$0xff] %vm254, %v253
    // Predicated region
    $region22: #{tpu_custom_call.1} parent=1 // pred_check
      %p256 = pneg %p72
    $region23: #{tpu_custom_call.1} parent=1 // pred_check_branch
      %258 = sbr.rel (%p256) target = $region25
    $region24: #{tpu_custom_call.1} parent=1 // pred_region
      %v259 = vld [vmem:[#allocation2] sm:$0xff]
      %v260 = vsel %vm254, %v259, 0.0
      %261 = vadd.xlane.f32.xlu0 %v260
      %v262 = vpop.xlane.xlu0 %261
      %v263 = vrot.slane %v262, 4
      %v264 = vadd.f32 %v262, %v263
      %v265 = vrot.slane %v264, 2
      %v266 = vadd.f32 %v264, %v265
      %v267 = vrot.slane %v266, 1
      %v268 = vadd.f32 %v266, %v267
      %s269 = vtos %v268
      %v270 = vstv %s269
      %271 = vst [vmem:[#allocation3] sm:$0xff] %v270
    $region25: #{tpu_custom_call.1} parent=1 // pred_fallthru
      _
    // Predicated region
    $region26: #{tpu_custom_call.1} parent=1 // pred_check
      _
    $region27: #{tpu_custom_call.1} parent=1 // pred_check_branch
      %273 = sbr.rel (0) target = $region29
    $region28: #{tpu_custom_call.1} parent=1 // pred_region
      %s275 = ssub.s32 128, 128
      %276 = vsyncadd [#allocation4], %s275
      %s278 = sshll.u32 [#allocation3], 4
      %s279 = int_to_ptr.vmem [resolvable:$true] %s278
      %281 = dma.vmem_to_hbm [thread:$0]  %s279, 128, %s4, [#allocation4]
    $region29: #{tpu_custom_call.1} parent=1 // pred_fallthru
      _
    // Predicated region
    $region30: #{tpu_custom_call.1} parent=1 // pred_check
      _
    $region31: #{tpu_custom_call.1} parent=1 // pred_check_branch
      %283 = sbr.rel (0) target = $region33
    $region32: #{tpu_custom_call.1} parent=1 // pred_region
      %284 = dma.done [#allocation4], 128
    $region33: #{tpu_custom_call.1} parent=1 // pred_fallthru
      _
    %285 = vsyncpa [#allocation4], 1

</llo_original>
